<compile_context>
chip_gen: v7x
topology: tpu7x:2x2x1
jax: 0.10.0
libtpu: 0.0.40
codegen_flags: <defaults>
</compile_context>

<pallas_src>
import functools

import jax
import jax.numpy as jnp
from jax.experimental import pallas as pl
from jax.experimental.pallas import tpu as pltpu


def _cnn_kernel(x_ref, wconv_ref, bconv_ref, wlin_ref, blin_ref, out_ref,
                *, F, K, O, T):
    # x_ref:     (L, B_tile)  VMEM  — one lane tile of transposed input
    # wconv_ref: (F*K,)       SMEM  — conv1d weight, flattened
    # bconv_ref: (F,)         SMEM  — conv1d bias
    # wlin_ref:  (O*F,)       SMEM  — linear weight (PyTorch (O, F)), flattened
    # blin_ref:  (O,)         SMEM  — linear bias
    # out_ref:   (O, B_tile)  VMEM  — lane-dense output tile
    x = x_ref[...]                                     # (L, Bt)

    # K sublane-shifted views, shared across all F filters.
    # conv[f, t, lane] = sum_k w[f, k] * x[t + k, lane] + b[f]
    xs = [x[k:k + T, :] for k in range(K)]             # each (T, Bt)

    # Conv1d (in_channels=1) as scalar-broadcast FMAs + ReLU + max over T.
    pooled = []                                        # F tensors of (1, Bt)
    for f in range(F):
        acc = wconv_ref[f * K] * xs[0]
        for k in range(1, K):
            acc = acc + wconv_ref[f * K + k] * xs[k]
        acc = acc + bconv_ref[f]                       # bias broadcast
        acc = jnp.maximum(acc, 0.0)                    # ReLU (VPU)
        pooled.append(jnp.max(acc, axis=0, keepdims=True))   # sublane reduce

    # Linear: out[o, lane] = sum_f wlin[o, f] * pooled[f, lane] + blin[o]
    rows = []
    for o in range(O):
        out_o = wlin_ref[o * F] * pooled[0]
        for f in range(1, F):
            out_o = out_o + wlin_ref[o * F + f] * pooled[f]
        rows.append(out_o + blin_ref[o])               # (1, Bt)

    out_ref[...] = jnp.concatenate(rows, axis=0).astype(out_ref.dtype)


def cnn_forward(x, wconv, bconv, wlin, blin, *, b_tile=None):
    """x: (B, L) f32; wconv: (F, K); bconv: (F,); wlin: (O, F); blin: (O,)."""
    B, L = x.shape
    F, K = wconv.shape
    O = wlin.shape[0]
    T = L - K + 1

    LANE = 128
    if b_tile is None:
        # One lane-dense tile of batch rows per grid step (cap to keep VMEM tiny
        # even on v7x's 64 MiB; 1024*L*4B << that).
        b_tile = min(1024, pl.cdiv(B, LANE) * LANE)
    B_pad = pl.cdiv(B, b_tile) * b_tile

    # Batch goes to lanes: transpose to (L, B) and zero-pad lanes.  Padded lanes
    # are lane-wise independent and sliced off below, so zero padding is safe.
    xT = x.T.astype(jnp.float32)                       # (L, B)
    if B_pad != B:
        xT = jnp.pad(xT, ((0, 0), (0, B_pad - B)))

    # Flatten the tiny parameters to 1-D for compact SMEM residency.
    wconv_f = wconv.reshape(F * K).astype(jnp.float32)
    bconv_f = bconv.reshape(F).astype(jnp.float32)
    wlin_f = wlin.reshape(O * F).astype(jnp.float32)
    blin_f = blin.reshape(O).astype(jnp.float32)

    kernel = functools.partial(_cnn_kernel, F=F, K=K, O=O, T=T)

    out = pl.pallas_call(
        kernel,
        out_shape=jax.ShapeDtypeStruct((O, B_pad), jnp.float32),
        grid_spec=pltpu.PrefetchScalarGridSpec(
            num_scalar_prefetch=0,
            grid=(B_pad // b_tile,),
            in_specs=[
                pl.BlockSpec((L, b_tile), lambda b: (0, b)),              # x tile
                pl.BlockSpec(memory_space=pltpu.MemorySpace.SMEM),        # wconv
                pl.BlockSpec(memory_space=pltpu.MemorySpace.SMEM),        # bconv
                pl.BlockSpec(memory_space=pltpu.MemorySpace.SMEM),        # wlin
                pl.BlockSpec(memory_space=pltpu.MemorySpace.SMEM),        # blin
            ],
            out_specs=pl.BlockSpec((O, b_tile), lambda b: (0, b)),
        ),
        compiler_params=pltpu.CompilerParams(
            dimension_semantics=("parallel",)),
    )(xT, wconv_f, bconv_f, wlin_f, blin_f)

    return out[:, :B].T                                 # (B, O)


def cnn_reference(x, wconv, bconv, wlin, blin):
    """Pure-JAX reference matching the PyTorch forward."""
    B, L = x.shape
    F, K = wconv.shape
    T = L - K + 1
    wins = jnp.stack([x[:, j:j + T] for j in range(K)], axis=-1)       # (B, T, K)
    conv = jnp.einsum('btk,fk->bft', wins, wconv) + bconv[None, :, None]
    conv = jnp.maximum(conv, 0.0)
    pooled = jnp.max(conv, axis=2)                                     # (B, F)
    return pooled @ wlin.T + blin


if __name__ == "__main__":
    # Small shapes consistent with the module:
    #   num_filters=8, filter_sizes=[3] (single size -> len(filter_sizes)*F == F),
    #   output_dim=4, batch=2, input length=16.
    B, L = 2, 16
    num_filters, filter_sizes, output_dim = 8, (3,), 4
    K = filter_sizes[0]

    key = jax.random.PRNGKey(0)
    kx, kw1, kb1, kw2, kb2 = jax.random.split(key, 5)

    x = jax.random.normal(kx, (B, L), dtype=jnp.float32)

    # Deterministic parameter init (uniform, roughly matching PyTorch's default scale).
    conv_bound = 1.0 / (1 * K) ** 0.5
    wconv = jax.random.uniform(kw1, (num_filters, K), jnp.float32,
                               -conv_bound, conv_bound)
    bconv = jax.random.uniform(kb1, (num_filters,), jnp.float32,
                               -conv_bound, conv_bound)
    lin_in = len(filter_sizes) * num_filters
    lin_bound = 1.0 / lin_in ** 0.5
    wlin = jax.random.uniform(kw2, (output_dim, lin_in), jnp.float32,
                              -lin_bound, lin_bound)
    blin = jax.random.uniform(kb2, (output_dim,), jnp.float32,
                              -lin_bound, lin_bound)

    out = cnn_forward(x, wconv, bconv, wlin, blin)
    out = jax.block_until_ready(out)

    ref = cnn_reference(x, wconv, bconv, wlin, blin)
    assert out.shape == (B, output_dim), out.shape
    assert jnp.allclose(out, ref, atol=1e-5, rtol=1e-5), (out, ref)

    print("KERNEL_OK")
</pallas_src>

<mosaic_0001>
module attributes {stable_mosaic.version = 11 : i64} {
  func.func @_cnn_kernel(%arg0: i32, %arg1: memref<16x128xf32, #tpu.memory_space<vmem>>, %arg2: memref<24xf32, #tpu.memory_space<smem>>, %arg3: memref<8xf32, #tpu.memory_space<smem>>, %arg4: memref<32xf32, #tpu.memory_space<smem>>, %arg5: memref<4xf32, #tpu.memory_space<smem>>, %arg6: memref<4x128xf32, #tpu.memory_space<vmem>>) attributes {dimension_semantics = [#tpu.dimension_semantics<parallel>], iteration_bounds = array<i64: 1>, scalar_prefetch = 0 : i64, scratch_operands = 0 : i64, tpu.core_type = #tpu.core_type<tc>, window_params = [{transform_indices = @transform_0, window_bounds = array<i64: 16, 128>}, {transform_indices = @transform_1, window_bounds = array<i64: 24>}, {transform_indices = @transform_2, window_bounds = array<i64: 8>}, {transform_indices = @transform_3, window_bounds = array<i64: 32>}, {transform_indices = @transform_4, window_bounds = array<i64: 4>}, {transform_indices = @transform_5, window_bounds = array<i64: 4, 128>}]} {
    %c0 = arith.constant 0 : index
    %c0_0 = arith.constant 0 : index
    %0 = vector.load %arg1[%c0, %c0_0] : memref<16x128xf32, #tpu.memory_space<vmem>>, vector<16x128xf32>
    %1 = vector.extract_strided_slice %0 {offsets = [0, 0], sizes = [14, 128], strides = [1, 1]} : vector<16x128xf32> to vector<14x128xf32>
    %2 = vector.extract_strided_slice %0 {offsets = [1, 0], sizes = [14, 128], strides = [1, 1]} : vector<16x128xf32> to vector<14x128xf32>
    %3 = vector.extract_strided_slice %0 {offsets = [2, 0], sizes = [14, 128], strides = [1, 1]} : vector<16x128xf32> to vector<14x128xf32>
    %c0_1 = arith.constant 0 : index
    %4 = memref.load %arg2[%c0_1] : memref<24xf32, #tpu.memory_space<smem>>
    %5 = vector.broadcast %4 : f32 to vector<14x128xf32>
    %6 = arith.mulf %5, %1 : vector<14x128xf32>
    %c1 = arith.constant 1 : index
    %7 = memref.load %arg2[%c1] : memref<24xf32, #tpu.memory_space<smem>>
    %8 = vector.broadcast %7 : f32 to vector<14x128xf32>
    %9 = arith.mulf %8, %2 : vector<14x128xf32>
    %10 = arith.addf %6, %9 : vector<14x128xf32>
    %c2 = arith.constant 2 : index
    %11 = memref.load %arg2[%c2] : memref<24xf32, #tpu.memory_space<smem>>
    %12 = vector.broadcast %11 : f32 to vector<14x128xf32>
    %13 = arith.mulf %12, %3 : vector<14x128xf32>
    %14 = arith.addf %10, %13 : vector<14x128xf32>
    %c0_2 = arith.constant 0 : index
    %15 = memref.load %arg3[%c0_2] : memref<8xf32, #tpu.memory_space<smem>>
    %16 = vector.broadcast %15 : f32 to vector<14x128xf32>
    %17 = arith.addf %14, %16 : vector<14x128xf32>
    %cst = arith.constant 0.000000e+00 : f32
    %18 = vector.broadcast %cst : f32 to vector<14x128xf32>
    %19 = arith.maximumf %17, %18 : vector<14x128xf32>
    %cst_3 = arith.constant dense<0xFF800000> : vector<128xf32>
    %20 = vector.multi_reduction <maximumf>, %19, %cst_3 [0] : vector<14x128xf32> to vector<128xf32>
    %21 = vector.shape_cast %20 : vector<128xf32> to vector<1x128xf32>
    %c3 = arith.constant 3 : index
    %22 = memref.load %arg2[%c3] : memref<24xf32, #tpu.memory_space<smem>>
    %23 = vector.broadcast %22 : f32 to vector<14x128xf32>
    %24 = arith.mulf %23, %1 : vector<14x128xf32>
    %c4 = arith.constant 4 : index
    %25 = memref.load %arg2[%c4] : memref<24xf32, #tpu.memory_space<smem>>
    %26 = vector.broadcast %25 : f32 to vector<14x128xf32>
    %27 = arith.mulf %26, %2 : vector<14x128xf32>
    %28 = arith.addf %24, %27 : vector<14x128xf32>
    %c5 = arith.constant 5 : index
    %29 = memref.load %arg2[%c5] : memref<24xf32, #tpu.memory_space<smem>>
    %30 = vector.broadcast %29 : f32 to vector<14x128xf32>
    %31 = arith.mulf %30, %3 : vector<14x128xf32>
    %32 = arith.addf %28, %31 : vector<14x128xf32>
    %c1_4 = arith.constant 1 : index
    %33 = memref.load %arg3[%c1_4] : memref<8xf32, #tpu.memory_space<smem>>
    %34 = vector.broadcast %33 : f32 to vector<14x128xf32>
    %35 = arith.addf %32, %34 : vector<14x128xf32>
    %cst_5 = arith.constant 0.000000e+00 : f32
    %36 = vector.broadcast %cst_5 : f32 to vector<14x128xf32>
    %37 = arith.maximumf %35, %36 : vector<14x128xf32>
    %cst_6 = arith.constant dense<0xFF800000> : vector<128xf32>
    %38 = vector.multi_reduction <maximumf>, %37, %cst_6 [0] : vector<14x128xf32> to vector<128xf32>
    %39 = vector.shape_cast %38 : vector<128xf32> to vector<1x128xf32>
    %c6 = arith.constant 6 : index
    %40 = memref.load %arg2[%c6] : memref<24xf32, #tpu.memory_space<smem>>
    %41 = vector.broadcast %40 : f32 to vector<14x128xf32>
    %42 = arith.mulf %41, %1 : vector<14x128xf32>
    %c7 = arith.constant 7 : index
    %43 = memref.load %arg2[%c7] : memref<24xf32, #tpu.memory_space<smem>>
    %44 = vector.broadcast %43 : f32 to vector<14x128xf32>
    %45 = arith.mulf %44, %2 : vector<14x128xf32>
    %46 = arith.addf %42, %45 : vector<14x128xf32>
    %c8 = arith.constant 8 : index
    %47 = memref.load %arg2[%c8] : memref<24xf32, #tpu.memory_space<smem>>
    %48 = vector.broadcast %47 : f32 to vector<14x128xf32>
    %49 = arith.mulf %48, %3 : vector<14x128xf32>
    %50 = arith.addf %46, %49 : vector<14x128xf32>
    %c2_7 = arith.constant 2 : index
    %51 = memref.load %arg3[%c2_7] : memref<8xf32, #tpu.memory_space<smem>>
    %52 = vector.broadcast %51 : f32 to vector<14x128xf32>
    %53 = arith.addf %50, %52 : vector<14x128xf32>
    %cst_8 = arith.constant 0.000000e+00 : f32
    %54 = vector.broadcast %cst_8 : f32 to vector<14x128xf32>
    %55 = arith.maximumf %53, %54 : vector<14x128xf32>
    %cst_9 = arith.constant dense<0xFF800000> : vector<128xf32>
    %56 = vector.multi_reduction <maximumf>, %55, %cst_9 [0] : vector<14x128xf32> to vector<128xf32>
    %57 = vector.shape_cast %56 : vector<128xf32> to vector<1x128xf32>
    %c9 = arith.constant 9 : index
    %58 = memref.load %arg2[%c9] : memref<24xf32, #tpu.memory_space<smem>>
    %59 = vector.broadcast %58 : f32 to vector<14x128xf32>
    %60 = arith.mulf %59, %1 : vector<14x128xf32>
    %c10 = arith.constant 10 : index
    %61 = memref.load %arg2[%c10] : memref<24xf32, #tpu.memory_space<smem>>
    %62 = vector.broadcast %61 : f32 to vector<14x128xf32>
    %63 = arith.mulf %62, %2 : vector<14x128xf32>
    %64 = arith.addf %60, %63 : vector<14x128xf32>
    %c11 = arith.constant 11 : index
    %65 = memref.load %arg2[%c11] : memref<24xf32, #tpu.memory_space<smem>>
    %66 = vector.broadcast %65 : f32 to vector<14x128xf32>
    %67 = arith.mulf %66, %3 : vector<14x128xf32>
    %68 = arith.addf %64, %67 : vector<14x128xf32>
    %c3_10 = arith.constant 3 : index
    %69 = memref.load %arg3[%c3_10] : memref<8xf32, #tpu.memory_space<smem>>
    %70 = vector.broadcast %69 : f32 to vector<14x128xf32>
    %71 = arith.addf %68, %70 : vector<14x128xf32>
    %cst_11 = arith.constant 0.000000e+00 : f32
    %72 = vector.broadcast %cst_11 : f32 to vector<14x128xf32>
    %73 = arith.maximumf %71, %72 : vector<14x128xf32>
    %cst_12 = arith.constant dense<0xFF800000> : vector<128xf32>
    %74 = vector.multi_reduction <maximumf>, %73, %cst_12 [0] : vector<14x128xf32> to vector<128xf32>
    %75 = vector.shape_cast %74 : vector<128xf32> to vector<1x128xf32>
    %c12 = arith.constant 12 : index
    %76 = memref.load %arg2[%c12] : memref<24xf32, #tpu.memory_space<smem>>
    %77 = vector.broadcast %76 : f32 to vector<14x128xf32>
    %78 = arith.mulf %77, %1 : vector<14x128xf32>
    %c13 = arith.constant 13 : index
    %79 = memref.load %arg2[%c13] : memref<24xf32, #tpu.memory_space<smem>>
    %80 = vector.broadcast %79 : f32 to vector<14x128xf32>
    %81 = arith.mulf %80, %2 : vector<14x128xf32>
    %82 = arith.addf %78, %81 : vector<14x128xf32>
    %c14 = arith.constant 14 : index
    %83 = memref.load %arg2[%c14] : memref<24xf32, #tpu.memory_space<smem>>
    %84 = vector.broadcast %83 : f32 to vector<14x128xf32>
    %85 = arith.mulf %84, %3 : vector<14x128xf32>
    %86 = arith.addf %82, %85 : vector<14x128xf32>
    %c4_13 = arith.constant 4 : index
    %87 = memref.load %arg3[%c4_13] : memref<8xf32, #tpu.memory_space<smem>>
    %88 = vector.broadcast %87 : f32 to vector<14x128xf32>
    %89 = arith.addf %86, %88 : vector<14x128xf32>
    %cst_14 = arith.constant 0.000000e+00 : f32
    %90 = vector.broadcast %cst_14 : f32 to vector<14x128xf32>
    %91 = arith.maximumf %89, %90 : vector<14x128xf32>
    %cst_15 = arith.constant dense<0xFF800000> : vector<128xf32>
    %92 = vector.multi_reduction <maximumf>, %91, %cst_15 [0] : vector<14x128xf32> to vector<128xf32>
    %93 = vector.shape_cast %92 : vector<128xf32> to vector<1x128xf32>
    %c15 = arith.constant 15 : index
    %94 = memref.load %arg2[%c15] : memref<24xf32, #tpu.memory_space<smem>>
    %95 = vector.broadcast %94 : f32 to vector<14x128xf32>
    %96 = arith.mulf %95, %1 : vector<14x128xf32>
    %c16 = arith.constant 16 : index
    %97 = memref.load %arg2[%c16] : memref<24xf32, #tpu.memory_space<smem>>
    %98 = vector.broadcast %97 : f32 to vector<14x128xf32>
    %99 = arith.mulf %98, %2 : vector<14x128xf32>
    %100 = arith.addf %96, %99 : vector<14x128xf32>
    %c17 = arith.constant 17 : index
    %101 = memref.load %arg2[%c17] : memref<24xf32, #tpu.memory_space<smem>>
    %102 = vector.broadcast %101 : f32 to vector<14x128xf32>
    %103 = arith.mulf %102, %3 : vector<14x128xf32>
    %104 = arith.addf %100, %103 : vector<14x128xf32>
    %c5_16 = arith.constant 5 : index
    %105 = memref.load %arg3[%c5_16] : memref<8xf32, #tpu.memory_space<smem>>
    %106 = vector.broadcast %105 : f32 to vector<14x128xf32>
    %107 = arith.addf %104, %106 : vector<14x128xf32>
    %cst_17 = arith.constant 0.000000e+00 : f32
    %108 = vector.broadcast %cst_17 : f32 to vector<14x128xf32>
    %109 = arith.maximumf %107, %108 : vector<14x128xf32>
    %cst_18 = arith.constant dense<0xFF800000> : vector<128xf32>
    %110 = vector.multi_reduction <maximumf>, %109, %cst_18 [0] : vector<14x128xf32> to vector<128xf32>
    %111 = vector.shape_cast %110 : vector<128xf32> to vector<1x128xf32>
    %c18 = arith.constant 18 : index
    %112 = memref.load %arg2[%c18] : memref<24xf32, #tpu.memory_space<smem>>
    %113 = vector.broadcast %112 : f32 to vector<14x128xf32>
    %114 = arith.mulf %113, %1 : vector<14x128xf32>
    %c19 = arith.constant 19 : index
    %115 = memref.load %arg2[%c19] : memref<24xf32, #tpu.memory_space<smem>>
    %116 = vector.broadcast %115 : f32 to vector<14x128xf32>
    %117 = arith.mulf %116, %2 : vector<14x128xf32>
    %118 = arith.addf %114, %117 : vector<14x128xf32>
    %c20 = arith.constant 20 : index
    %119 = memref.load %arg2[%c20] : memref<24xf32, #tpu.memory_space<smem>>
    %120 = vector.broadcast %119 : f32 to vector<14x128xf32>
    %121 = arith.mulf %120, %3 : vector<14x128xf32>
    %122 = arith.addf %118, %121 : vector<14x128xf32>
    %c6_19 = arith.constant 6 : index
    %123 = memref.load %arg3[%c6_19] : memref<8xf32, #tpu.memory_space<smem>>
    %124 = vector.broadcast %123 : f32 to vector<14x128xf32>
    %125 = arith.addf %122, %124 : vector<14x128xf32>
    %cst_20 = arith.constant 0.000000e+00 : f32
    %126 = vector.broadcast %cst_20 : f32 to vector<14x128xf32>
    %127 = arith.maximumf %125, %126 : vector<14x128xf32>
    %cst_21 = arith.constant dense<0xFF800000> : vector<128xf32>
    %128 = vector.multi_reduction <maximumf>, %127, %cst_21 [0] : vector<14x128xf32> to vector<128xf32>
    %129 = vector.shape_cast %128 : vector<128xf32> to vector<1x128xf32>
    %c21 = arith.constant 21 : index
    %130 = memref.load %arg2[%c21] : memref<24xf32, #tpu.memory_space<smem>>
    %131 = vector.broadcast %130 : f32 to vector<14x128xf32>
    %132 = arith.mulf %131, %1 : vector<14x128xf32>
    %c22 = arith.constant 22 : index
    %133 = memref.load %arg2[%c22] : memref<24xf32, #tpu.memory_space<smem>>
    %134 = vector.broadcast %133 : f32 to vector<14x128xf32>
    %135 = arith.mulf %134, %2 : vector<14x128xf32>
    %136 = arith.addf %132, %135 : vector<14x128xf32>
    %c23 = arith.constant 23 : index
    %137 = memref.load %arg2[%c23] : memref<24xf32, #tpu.memory_space<smem>>
    %138 = vector.broadcast %137 : f32 to vector<14x128xf32>
    %139 = arith.mulf %138, %3 : vector<14x128xf32>
    %140 = arith.addf %136, %139 : vector<14x128xf32>
    %c7_22 = arith.constant 7 : index
    %141 = memref.load %arg3[%c7_22] : memref<8xf32, #tpu.memory_space<smem>>
    %142 = vector.broadcast %141 : f32 to vector<14x128xf32>
    %143 = arith.addf %140, %142 : vector<14x128xf32>
    %cst_23 = arith.constant 0.000000e+00 : f32
    %144 = vector.broadcast %cst_23 : f32 to vector<14x128xf32>
    %145 = arith.maximumf %143, %144 : vector<14x128xf32>
    %cst_24 = arith.constant dense<0xFF800000> : vector<128xf32>
    %146 = vector.multi_reduction <maximumf>, %145, %cst_24 [0] : vector<14x128xf32> to vector<128xf32>
    %147 = vector.shape_cast %146 : vector<128xf32> to vector<1x128xf32>
    %c0_25 = arith.constant 0 : index
    %148 = memref.load %arg4[%c0_25] : memref<32xf32, #tpu.memory_space<smem>>
    %149 = vector.broadcast %148 : f32 to vector<1x128xf32>
    %150 = arith.mulf %149, %21 : vector<1x128xf32>
    %c1_26 = arith.constant 1 : index
    %151 = memref.load %arg4[%c1_26] : memref<32xf32, #tpu.memory_space<smem>>
    %152 = vector.broadcast %151 : f32 to vector<1x128xf32>
    %153 = arith.mulf %152, %39 : vector<1x128xf32>
    %154 = arith.addf %150, %153 : vector<1x128xf32>
    %c2_27 = arith.constant 2 : index
    %155 = memref.load %arg4[%c2_27] : memref<32xf32, #tpu.memory_space<smem>>
    %156 = vector.broadcast %155 : f32 to vector<1x128xf32>
    %157 = arith.mulf %156, %57 : vector<1x128xf32>
    %158 = arith.addf %154, %157 : vector<1x128xf32>
    %c3_28 = arith.constant 3 : index
    %159 = memref.load %arg4[%c3_28] : memref<32xf32, #tpu.memory_space<smem>>
    %160 = vector.broadcast %159 : f32 to vector<1x128xf32>
    %161 = arith.mulf %160, %75 : vector<1x128xf32>
    %162 = arith.addf %158, %161 : vector<1x128xf32>
    %c4_29 = arith.constant 4 : index
    %163 = memref.load %arg4[%c4_29] : memref<32xf32, #tpu.memory_space<smem>>
    %164 = vector.broadcast %163 : f32 to vector<1x128xf32>
    %165 = arith.mulf %164, %93 : vector<1x128xf32>
    %166 = arith.addf %162, %165 : vector<1x128xf32>
    %c5_30 = arith.constant 5 : index
    %167 = memref.load %arg4[%c5_30] : memref<32xf32, #tpu.memory_space<smem>>
    %168 = vector.broadcast %167 : f32 to vector<1x128xf32>
    %169 = arith.mulf %168, %111 : vector<1x128xf32>
    %170 = arith.addf %166, %169 : vector<1x128xf32>
    %c6_31 = arith.constant 6 : index
    %171 = memref.load %arg4[%c6_31] : memref<32xf32, #tpu.memory_space<smem>>
    %172 = vector.broadcast %171 : f32 to vector<1x128xf32>
    %173 = arith.mulf %172, %129 : vector<1x128xf32>
    %174 = arith.addf %170, %173 : vector<1x128xf32>
    %c7_32 = arith.constant 7 : index
    %175 = memref.load %arg4[%c7_32] : memref<32xf32, #tpu.memory_space<smem>>
    %176 = vector.broadcast %175 : f32 to vector<1x128xf32>
    %177 = arith.mulf %176, %147 : vector<1x128xf32>
    %178 = arith.addf %174, %177 : vector<1x128xf32>
    %c0_33 = arith.constant 0 : index
    %179 = memref.load %arg5[%c0_33] : memref<4xf32, #tpu.memory_space<smem>>
    %180 = vector.broadcast %179 : f32 to vector<1x128xf32>
    %181 = arith.addf %178, %180 : vector<1x128xf32>
    %c8_34 = arith.constant 8 : index
    %182 = memref.load %arg4[%c8_34] : memref<32xf32, #tpu.memory_space<smem>>
    %183 = vector.broadcast %182 : f32 to vector<1x128xf32>
    %184 = arith.mulf %183, %21 : vector<1x128xf32>
    %c9_35 = arith.constant 9 : index
    %185 = memref.load %arg4[%c9_35] : memref<32xf32, #tpu.memory_space<smem>>
    %186 = vector.broadcast %185 : f32 to vector<1x128xf32>
    %187 = arith.mulf %186, %39 : vector<1x128xf32>
    %188 = arith.addf %184, %187 : vector<1x128xf32>
    %c10_36 = arith.constant 10 : index
    %189 = memref.load %arg4[%c10_36] : memref<32xf32, #tpu.memory_space<smem>>
    %190 = vector.broadcast %189 : f32 to vector<1x128xf32>
    %191 = arith.mulf %190, %57 : vector<1x128xf32>
    %192 = arith.addf %188, %191 : vector<1x128xf32>
    %c11_37 = arith.constant 11 : index
    %193 = memref.load %arg4[%c11_37] : memref<32xf32, #tpu.memory_space<smem>>
    %194 = vector.broadcast %193 : f32 to vector<1x128xf32>
    %195 = arith.mulf %194, %75 : vector<1x128xf32>
    %196 = arith.addf %192, %195 : vector<1x128xf32>
    %c12_38 = arith.constant 12 : index
    %197 = memref.load %arg4[%c12_38] : memref<32xf32, #tpu.memory_space<smem>>
    %198 = vector.broadcast %197 : f32 to vector<1x128xf32>
    %199 = arith.mulf %198, %93 : vector<1x128xf32>
    %200 = arith.addf %196, %199 : vector<1x128xf32>
    %c13_39 = arith.constant 13 : index
    %201 = memref.load %arg4[%c13_39] : memref<32xf32, #tpu.memory_space<smem>>
    %202 = vector.broadcast %201 : f32 to vector<1x128xf32>
    %203 = arith.mulf %202, %111 : vector<1x128xf32>
    %204 = arith.addf %200, %203 : vector<1x128xf32>
    %c14_40 = arith.constant 14 : index
    %205 = memref.load %arg4[%c14_40] : memref<32xf32, #tpu.memory_space<smem>>
    %206 = vector.broadcast %205 : f32 to vector<1x128xf32>
    %207 = arith.mulf %206, %129 : vector<1x128xf32>
    %208 = arith.addf %204, %207 : vector<1x128xf32>
    %c15_41 = arith.constant 15 : index
    %209 = memref.load %arg4[%c15_41] : memref<32xf32, #tpu.memory_space<smem>>
    %210 = vector.broadcast %209 : f32 to vector<1x128xf32>
    %211 = arith.mulf %210, %147 : vector<1x128xf32>
    %212 = arith.addf %208, %211 : vector<1x128xf32>
    %c1_42 = arith.constant 1 : index
    %213 = memref.load %arg5[%c1_42] : memref<4xf32, #tpu.memory_space<smem>>
    %214 = vector.broadcast %213 : f32 to vector<1x128xf32>
    %215 = arith.addf %212, %214 : vector<1x128xf32>
    %c16_43 = arith.constant 16 : index
    %216 = memref.load %arg4[%c16_43] : memref<32xf32, #tpu.memory_space<smem>>
    %217 = vector.broadcast %216 : f32 to vector<1x128xf32>
    %218 = arith.mulf %217, %21 : vector<1x128xf32>
    %c17_44 = arith.constant 17 : index
    %219 = memref.load %arg4[%c17_44] : memref<32xf32, #tpu.memory_space<smem>>
    %220 = vector.broadcast %219 : f32 to vector<1x128xf32>
    %221 = arith.mulf %220, %39 : vector<1x128xf32>
    %222 = arith.addf %218, %221 : vector<1x128xf32>
    %c18_45 = arith.constant 18 : index
    %223 = memref.load %arg4[%c18_45] : memref<32xf32, #tpu.memory_space<smem>>
    %224 = vector.broadcast %223 : f32 to vector<1x128xf32>
    %225 = arith.mulf %224, %57 : vector<1x128xf32>
    %226 = arith.addf %222, %225 : vector<1x128xf32>
    %c19_46 = arith.constant 19 : index
    %227 = memref.load %arg4[%c19_46] : memref<32xf32, #tpu.memory_space<smem>>
    %228 = vector.broadcast %227 : f32 to vector<1x128xf32>
    %229 = arith.mulf %228, %75 : vector<1x128xf32>
    %230 = arith.addf %226, %229 : vector<1x128xf32>
    %c20_47 = arith.constant 20 : index
    %231 = memref.load %arg4[%c20_47] : memref<32xf32, #tpu.memory_space<smem>>
    %232 = vector.broadcast %231 : f32 to vector<1x128xf32>
    %233 = arith.mulf %232, %93 : vector<1x128xf32>
    %234 = arith.addf %230, %233 : vector<1x128xf32>
    %c21_48 = arith.constant 21 : index
    %235 = memref.load %arg4[%c21_48] : memref<32xf32, #tpu.memory_space<smem>>
    %236 = vector.broadcast %235 : f32 to vector<1x128xf32>
    %237 = arith.mulf %236, %111 : vector<1x128xf32>
    %238 = arith.addf %234, %237 : vector<1x128xf32>
    %c22_49 = arith.constant 22 : index
    %239 = memref.load %arg4[%c22_49] : memref<32xf32, #tpu.memory_space<smem>>
    %240 = vector.broadcast %239 : f32 to vector<1x128xf32>
    %241 = arith.mulf %240, %129 : vector<1x128xf32>
    %242 = arith.addf %238, %241 : vector<1x128xf32>
    %c23_50 = arith.constant 23 : index
    %243 = memref.load %arg4[%c23_50] : memref<32xf32, #tpu.memory_space<smem>>
    %244 = vector.broadcast %243 : f32 to vector<1x128xf32>
    %245 = arith.mulf %244, %147 : vector<1x128xf32>
    %246 = arith.addf %242, %245 : vector<1x128xf32>
    %c2_51 = arith.constant 2 : index
    %247 = memref.load %arg5[%c2_51] : memref<4xf32, #tpu.memory_space<smem>>
    %248 = vector.broadcast %247 : f32 to vector<1x128xf32>
    %249 = arith.addf %246, %248 : vector<1x128xf32>
    %c24 = arith.constant 24 : index
    %250 = memref.load %arg4[%c24] : memref<32xf32, #tpu.memory_space<smem>>
    %251 = vector.broadcast %250 : f32 to vector<1x128xf32>
    %252 = arith.mulf %251, %21 : vector<1x128xf32>
    %c25 = arith.constant 25 : index
    %253 = memref.load %arg4[%c25] : memref<32xf32, #tpu.memory_space<smem>>
    %254 = vector.broadcast %253 : f32 to vector<1x128xf32>
    %255 = arith.mulf %254, %39 : vector<1x128xf32>
    %256 = arith.addf %252, %255 : vector<1x128xf32>
    %c26 = arith.constant 26 : index
    %257 = memref.load %arg4[%c26] : memref<32xf32, #tpu.memory_space<smem>>
    %258 = vector.broadcast %257 : f32 to vector<1x128xf32>
    %259 = arith.mulf %258, %57 : vector<1x128xf32>
    %260 = arith.addf %256, %259 : vector<1x128xf32>
    %c27 = arith.constant 27 : index
    %261 = memref.load %arg4[%c27] : memref<32xf32, #tpu.memory_space<smem>>
    %262 = vector.broadcast %261 : f32 to vector<1x128xf32>
    %263 = arith.mulf %262, %75 : vector<1x128xf32>
    %264 = arith.addf %260, %263 : vector<1x128xf32>
    %c28 = arith.constant 28 : index
    %265 = memref.load %arg4[%c28] : memref<32xf32, #tpu.memory_space<smem>>
    %266 = vector.broadcast %265 : f32 to vector<1x128xf32>
    %267 = arith.mulf %266, %93 : vector<1x128xf32>
    %268 = arith.addf %264, %267 : vector<1x128xf32>
    %c29 = arith.constant 29 : index
    %269 = memref.load %arg4[%c29] : memref<32xf32, #tpu.memory_space<smem>>
    %270 = vector.broadcast %269 : f32 to vector<1x128xf32>
    %271 = arith.mulf %270, %111 : vector<1x128xf32>
    %272 = arith.addf %268, %271 : vector<1x128xf32>
    %c30 = arith.constant 30 : index
    %273 = memref.load %arg4[%c30] : memref<32xf32, #tpu.memory_space<smem>>
    %274 = vector.broadcast %273 : f32 to vector<1x128xf32>
    %275 = arith.mulf %274, %129 : vector<1x128xf32>
    %276 = arith.addf %272, %275 : vector<1x128xf32>
    %c31 = arith.constant 31 : index
    %277 = memref.load %arg4[%c31] : memref<32xf32, #tpu.memory_space<smem>>
    %278 = vector.broadcast %277 : f32 to vector<1x128xf32>
    %279 = arith.mulf %278, %147 : vector<1x128xf32>
    %280 = arith.addf %276, %279 : vector<1x128xf32>
    %c3_52 = arith.constant 3 : index
    %281 = memref.load %arg5[%c3_52] : memref<4xf32, #tpu.memory_space<smem>>
    %282 = vector.broadcast %281 : f32 to vector<1x128xf32>
    %283 = arith.addf %280, %282 : vector<1x128xf32>
    %284 = tpu.concatenate %181, %215, %249, %283 in 0 : vector<1x128xf32>, vector<1x128xf32>, vector<1x128xf32>, vector<1x128xf32> -> vector<4x128xf32>
    %c0_53 = arith.constant 0 : index
    %c0_54 = arith.constant 0 : index
    %285 = vector.load %arg6[%c0_53, %c0_54] : memref<4x128xf32, #tpu.memory_space<vmem>>, vector<4x128xf32>
    tpu.vector_store %arg6[%c0_53, %c0_54], %284 {strides = array<i32>} : memref<4x128xf32, #tpu.memory_space<vmem>>, vector<4x128xf32>,
    return
  }
  func.func @transform_0(%arg0: i32) -> (i32, i32) {
    %c0_i32 = arith.constant 0 : i32
    %c0_i32_0 = arith.constant 0 : i32
    return %c0_i32, %arg0 : i32, i32
  }
  func.func @transform_1(%arg0: i32) -> i32 {
    %c0_i32 = arith.constant 0 : i32
    %c0_i32_0 = arith.constant 0 : i32
    return %c0_i32 : i32
  }
  func.func @transform_2(%arg0: i32) -> i32 {
    %c0_i32 = arith.constant 0 : i32
    %c0_i32_0 = arith.constant 0 : i32
    return %c0_i32 : i32
  }
  func.func @transform_3(%arg0: i32) -> i32 {
    %c0_i32 = arith.constant 0 : i32
    %c0_i32_0 = arith.constant 0 : i32
    return %c0_i32 : i32
  }
  func.func @transform_4(%arg0: i32) -> i32 {
    %c0_i32 = arith.constant 0 : i32
    %c0_i32_0 = arith.constant 0 : i32
    return %c0_i32 : i32
  }
  func.func @transform_5(%arg0: i32) -> (i32, i32) {
    %c0_i32 = arith.constant 0 : i32
    %c0_i32_0 = arith.constant 0 : i32
    return %c0_i32, %arg0 : i32, i32
  }
}

</mosaic_0001>

<llo_original>
// kernel: tpu_custom_call.1
$region0: #{tpu_custom_call.1}
  #allocation0 [shape = 'u32[]', space=smem, size = 0x4, offset = 0x4, fixed_abs, tag = 'smem constant byte address 0x4 - core index']
  #allocation1 [shape = 'u32[144,128]{1,0:T(1,128)}', space=vmem, size = 0x12000, scoped, tag = 'internal scratch']
  %s0 = inlined_call_operand.hbm [shape: f32[16,128], index: 0, kind: input, shape index: {}]
  %s1 = inlined_call_operand.vmem [shape: f32[24], index: 1, kind: input, shape index: {}]
  %s2 = inlined_call_operand.vmem [shape: f32[8], index: 2, kind: input, shape index: {}]
  %s3 = inlined_call_operand.vmem [shape: f32[32], index: 3, kind: input, shape index: {}]
  %s4 = inlined_call_operand.vmem [shape: f32[4], index: 4, kind: input, shape index: {}]
  %s5 = inlined_call_operand.hbm [shape: f32[4,128], index: 5, kind: output, shape index: {}]
  %s6 = sld [smem:[#allocation0]]
  $region50: #{tpu_custom_call.1} parent=0
    _
  %s8 = ssub.s32 1, %s6
  %s9 = scalar_select 0, %s8, %s6
  $region1: #{tpu_custom_call.1} parent=0
    #allocation2 [shape = 'u8[8192]{0}', space=vmem, size = 0x2000, scoped, tag = 'input window, operand 0, single buffered']
    #allocation3 [shape = 's32[1]{0}', space=sflag, size = 0x4, scoped, tag = 'scoped memory for tpu_custom_call.1']
    #allocation4 [shape = 's32[1]{0}', space=sflag, size = 0x4, scoped, tag = 'scoped memory for tpu_custom_call.1']
    #allocation5 [shape = 's32[1]{0}', space=sflag, size = 0x4, scoped, tag = 'scoped memory for tpu_custom_call.1']
    #allocation6 [shape = 'u8[512]{0}', space=smem, size = 0x200, scoped, tag = 'input window, operand 1, single buffered']
    #allocation7 [shape = 'u8[512]{0}', space=smem, size = 0x200, scoped, tag = 'input window, operand 2, single buffered']
    #allocation8 [shape = 's32[1]{0}', space=sflag, size = 0x4, scoped, tag = 'scoped memory for tpu_custom_call.1']
    #allocation9 [shape = 'u8[512]{0}', space=smem, size = 0x200, scoped, tag = 'input window, operand 3, single buffered']
    #allocation10 [shape = 'u8[512]{0}', space=smem, size = 0x200, scoped, tag = 'input window, operand 4, single buffered']
    #allocation11 [shape = 's32[1]{0}', space=sflag, size = 0x4, scoped, tag = 'scoped memory for tpu_custom_call.1']
    #allocation12 [shape = 'u8[2048]{0}', space=vmem, size = 0x800, scoped, tag = 'output window, operand 0, single buffered']
    %10 = vsyncpa [#allocation3], 0
    %11 = vsyncpa [#allocation5], 0
    %12 = vsyncpa [#allocation8], 0
    %13 = vsyncpa [#allocation11], 0
    %14 = vsyncpa [#allocation4], 0
    // Predicated region
    $region2: #{tpu_custom_call.1} parent=1 // pred_check
      _
    $region3: #{tpu_custom_call.1} parent=1 // pred_check_branch
      %16 = sbr.rel (0) target = $region5
    $region4: #{tpu_custom_call.1} parent=1 // pred_region
      %s18 = ssub.s32 256, 256
      %19 = vsyncadd [#allocation3], %s18
      %s20 = sshll.u32 [#allocation2], 4
      %s21 = int_to_ptr.vmem [resolvable:$true] %s20
      %26 = dma.hbm_to_vmem [thread:$0]  %s0, 256, %s21, [#allocation3], 128, 128, 8
    $region5: #{tpu_custom_call.1} parent=1 // pred_fallthru
      _
    // Predicated region
    $region6: #{tpu_custom_call.1} parent=1 // pred_check
      _
    $region7: #{tpu_custom_call.1} parent=1 // pred_check_branch
      %28 = sbr.rel (0) target = $region9
    $region8: #{tpu_custom_call.1} parent=1 // pred_region
      %s30 = ssub.s32 16, 16
      %31 = vsyncadd [#allocation5], %s30
      %s33 = sshll.u32 %s1, 4
      %s34 = int_to_ptr.vmem [resolvable:$true] %s33
      %36 = dma.vmem_to_smem %s34, 16, [#allocation6], [#allocation5]
    $region9: #{tpu_custom_call.1} parent=1 // pred_fallthru
      _
    // Predicated region
    $region10: #{tpu_custom_call.1} parent=1 // pred_check
      _
    $region11: #{tpu_custom_call.1} parent=1 // pred_check_branch
      %38 = sbr.rel (0) target = $region13
    $region12: #{tpu_custom_call.1} parent=1 // pred_region
      %s40 = ssub.s32 16, 16
      %41 = vsyncadd [#allocation8], %s40
      %s43 = sshll.u32 %s2, 4
      %s44 = int_to_ptr.vmem [resolvable:$true] %s43
      %46 = dma.vmem_to_smem %s44, 16, [#allocation7], [#allocation8]
    $region13: #{tpu_custom_call.1} parent=1 // pred_fallthru
      _
    // Predicated region
    $region14: #{tpu_custom_call.1} parent=1 // pred_check
      _
    $region15: #{tpu_custom_call.1} parent=1 // pred_check_branch
      %48 = sbr.rel (0) target = $region17
    $region16: #{tpu_custom_call.1} parent=1 // pred_region
      %s50 = ssub.s32 16, 16
      %51 = vsyncadd [#allocation8], %s50
      %s53 = sshll.u32 %s3, 4
      %s54 = int_to_ptr.vmem [resolvable:$true] %s53
      %56 = dma.vmem_to_smem %s54, 16, [#allocation9], [#allocation8]
    $region17: #{tpu_custom_call.1} parent=1 // pred_fallthru
      _
    // Predicated region
    $region18: #{tpu_custom_call.1} parent=1 // pred_check
      _
    $region19: #{tpu_custom_call.1} parent=1 // pred_check_branch
      %58 = sbr.rel (0) target = $region21
    $region20: #{tpu_custom_call.1} parent=1 // pred_region
      %s60 = ssub.s32 16, 16
      %61 = vsyncadd [#allocation11], %s60
      %s63 = sshll.u32 %s4, 4
      %s64 = int_to_ptr.vmem [resolvable:$true] %s63
      %66 = dma.vmem_to_smem %s64, 16, [#allocation10], [#allocation11]
    $region21: #{tpu_custom_call.1} parent=1 // pred_fallthru
      _
    // Predicated region
    $region22: #{tpu_custom_call.1} parent=1 // pred_check
      _
    $region23: #{tpu_custom_call.1} parent=1 // pred_check_branch
      %68 = sbr.rel (0) target = $region25
    $region24: #{tpu_custom_call.1} parent=1 // pred_region
      %69 = dma.done [#allocation3], 256
    $region25: #{tpu_custom_call.1} parent=1 // pred_fallthru
      _
    // Predicated region
    $region26: #{tpu_custom_call.1} parent=1 // pred_check
      _
    $region27: #{tpu_custom_call.1} parent=1 // pred_check_branch
      %71 = sbr.rel (0) target = $region29
    $region28: #{tpu_custom_call.1} parent=1 // pred_region
      %72 = dma.done [#allocation5], 16
    $region29: #{tpu_custom_call.1} parent=1 // pred_fallthru
      _
    // Predicated region
    $region30: #{tpu_custom_call.1} parent=1 // pred_check
      _
    $region31: #{tpu_custom_call.1} parent=1 // pred_check_branch
      %74 = sbr.rel (0) target = $region33
    $region32: #{tpu_custom_call.1} parent=1 // pred_region
      %75 = dma.done [#allocation8], 16
    $region33: #{tpu_custom_call.1} parent=1 // pred_fallthru
      _
    // Predicated region
    $region34: #{tpu_custom_call.1} parent=1 // pred_check
      _
    $region35: #{tpu_custom_call.1} parent=1 // pred_check_branch
      %77 = sbr.rel (0) target = $region37
    $region36: #{tpu_custom_call.1} parent=1 // pred_region
      %78 = dma.done [#allocation8], 16
    $region37: #{tpu_custom_call.1} parent=1 // pred_fallthru
      _
    // Predicated region
    $region38: #{tpu_custom_call.1} parent=1 // pred_check
      _
    $region39: #{tpu_custom_call.1} parent=1 // pred_check_branch
      %80 = sbr.rel (0) target = $region41
    $region40: #{tpu_custom_call.1} parent=1 // pred_region
      %81 = dma.done [#allocation11], 16
    $region41: #{tpu_custom_call.1} parent=1 // pred_fallthru
      _
    %82 = sfence
    %v83 = vld [vmem:[#allocation2] sm:$0xff]
    %v84 = vld [vmem:[#allocation2 + $0x8] sm:$0xff]
    %s85 = sld [smem:[#allocation6]]
    %v86 = vstv %s85
    %v87 = vmul.f32 %v86, %v83
    %v88 = vmul.f32 %v86, %v84
    %s89 = sld [smem:[#allocation6 + $0x1]]
    %v90 = vstv %s89
    %v91 = vmul.f32 %v90, %v83
    %v92 = vmul.f32 %v90, %v84
    %vm95 = vcmask 1046528
    %v96 = vrot.slane %v91, 1
    %v97 = vrot.slane %v92, 1
    %v98 = vsel %vm95, %v96, %v97
    %v101 = vadd.f32 %v87, %v98
    %v102 = vadd.f32 %v88, %v97
    %s103 = sld [smem:[#allocation6 + $0x2]]
    %v104 = vstv %s103
    %v105 = vmul.f32 %v104, %v83
    %v106 = vmul.f32 %v104, %v84
    %vm109 = vcmask 1045504
    %v110 = vrot.slane %v105, 2
    %v111 = vrot.slane %v106, 2
    %v112 = vsel %vm109, %v110, %v111
    %v115 = vadd.f32 %v101, %v112
    %v116 = vadd.f32 %v102, %v111
    %s117 = sld [smem:[#allocation7]]
    %v118 = vstv %s117
    %v119 = vadd.f32 %v115, %v118
    %v120 = vadd.f32 %v116, %v118
    %v121 = vmax.f32 %v119, 0.0
    %v122 = vmax.f32 %v120, 0.0
    %v123 = vsel %vm109, %v122, -inf
    %v124 = vmax.f32 %v121, %v123
    %v125 = vrot.slane %v124, 4
    %v126 = vmax.f32 %v124, %v125
    %v127 = vrot.slane %v126, 2
    %v128 = vmax.f32 %v126, %v127
    %v129 = vrot.slane %v128, 1
    %v130 = vmax.f32 %v128, %v129
    %s131 = sld [smem:[#allocation6 + $0x3]]
    %v132 = vstv %s131
    %v133 = vmul.f32 %v132, %v83
    %v134 = vmul.f32 %v132, %v84
    %s135 = sld [smem:[#allocation6 + $0x4]]
    %v136 = vstv %s135
    %v137 = vmul.f32 %v136, %v83
    %v138 = vmul.f32 %v136, %v84
    %v141 = vrot.slane %v137, 1
    %v142 = vrot.slane %v138, 1
    %v143 = vsel %vm95, %v141, %v142
    %v146 = vadd.f32 %v133, %v143
    %v147 = vadd.f32 %v134, %v142
    %s148 = sld [smem:[#allocation6 + $0x5]]
    %v149 = vstv %s148
    %v150 = vmul.f32 %v149, %v83
    %v151 = vmul.f32 %v149, %v84
    %v154 = vrot.slane %v150, 2
    %v155 = vrot.slane %v151, 2
    %v156 = vsel %vm109, %v154, %v155
    %v159 = vadd.f32 %v146, %v156
    %v160 = vadd.f32 %v147, %v155
    %s161 = sld [smem:[#allocation7 + $0x1]]
    %v162 = vstv %s161
    %v163 = vadd.f32 %v159, %v162
    %v164 = vadd.f32 %v160, %v162
    %v165 = vmax.f32 %v163, 0.0
    %v166 = vmax.f32 %v164, 0.0
    %v167 = vsel %vm109, %v166, -inf
    %v168 = vmax.f32 %v165, %v167
    %v169 = vrot.slane %v168, 4
    %v170 = vmax.f32 %v168, %v169
    %v171 = vrot.slane %v170, 2
    %v172 = vmax.f32 %v170, %v171
    %v173 = vrot.slane %v172, 1
    %v174 = vmax.f32 %v172, %v173
    %s175 = sld [smem:[#allocation6 + $0x6]]
    %v176 = vstv %s175
    %v177 = vmul.f32 %v176, %v83
    %v178 = vmul.f32 %v176, %v84
    %s179 = sld [smem:[#allocation6 + $0x7]]
    %v180 = vstv %s179
    %v181 = vmul.f32 %v180, %v83
    %v182 = vmul.f32 %v180, %v84
    %v185 = vrot.slane %v181, 1
    %v186 = vrot.slane %v182, 1
    %v187 = vsel %vm95, %v185, %v186
    %v190 = vadd.f32 %v177, %v187
    %v191 = vadd.f32 %v178, %v186
    %s192 = sld [smem:[#allocation6 + $0x8]]
    %v193 = vstv %s192
    %v194 = vmul.f32 %v193, %v83
    %v195 = vmul.f32 %v193, %v84
    %v198 = vrot.slane %v194, 2
    %v199 = vrot.slane %v195, 2
    %v200 = vsel %vm109, %v198, %v199
    %v203 = vadd.f32 %v190, %v200
    %v204 = vadd.f32 %v191, %v199
    %s205 = sld [smem:[#allocation7 + $0x2]]
    %v206 = vstv %s205
    %v207 = vadd.f32 %v203, %v206
    %v208 = vadd.f32 %v204, %v206
    %v209 = vmax.f32 %v207, 0.0
    %v210 = vmax.f32 %v208, 0.0
    %v211 = vsel %vm109, %v210, -inf
    %v212 = vmax.f32 %v209, %v211
    %v213 = vrot.slane %v212, 4
    %v214 = vmax.f32 %v212, %v213
    %v215 = vrot.slane %v214, 2
    %v216 = vmax.f32 %v214, %v215
    %v217 = vrot.slane %v216, 1
    %v218 = vmax.f32 %v216, %v217
    %s219 = sld [smem:[#allocation6 + $0x9]]
    %v220 = vstv %s219
    %v221 = vmul.f32 %v220, %v83
    %v222 = vmul.f32 %v220, %v84
    %s223 = sld [smem:[#allocation6 + $0xa]]
    %v224 = vstv %s223
    %v225 = vmul.f32 %v224, %v83
    %v226 = vmul.f32 %v224, %v84
    %v229 = vrot.slane %v225, 1
    %v230 = vrot.slane %v226, 1
    %v231 = vsel %vm95, %v229, %v230
    %v234 = vadd.f32 %v221, %v231
    %v235 = vadd.f32 %v222, %v230
    %s236 = sld [smem:[#allocation6 + $0xb]]
    %v237 = vstv %s236
    %v238 = vmul.f32 %v237, %v83
    %v239 = vmul.f32 %v237, %v84
    %v242 = vrot.slane %v238, 2
    %v243 = vrot.slane %v239, 2
    %v244 = vsel %vm109, %v242, %v243
    %v247 = vadd.f32 %v234, %v244
    %v248 = vadd.f32 %v235, %v243
    %s249 = sld [smem:[#allocation7 + $0x3]]
    %v250 = vstv %s249
    %v251 = vadd.f32 %v247, %v250
    %v252 = vadd.f32 %v248, %v250
    %v253 = vmax.f32 %v251, 0.0
    %v254 = vmax.f32 %v252, 0.0
    %v255 = vsel %vm109, %v254, -inf
    %v256 = vmax.f32 %v253, %v255
    %v257 = vrot.slane %v256, 4
    %v258 = vmax.f32 %v256, %v257
    %v259 = vrot.slane %v258, 2
    %v260 = vmax.f32 %v258, %v259
    %v261 = vrot.slane %v260, 1
    %v262 = vmax.f32 %v260, %v261
    %s263 = sld [smem:[#allocation6 + $0xc]]
    %v264 = vstv %s263
    %v265 = vmul.f32 %v264, %v83
    %v266 = vmul.f32 %v264, %v84
    %s267 = sld [smem:[#allocation6 + $0xd]]
    %v268 = vstv %s267
    %v269 = vmul.f32 %v268, %v83
    %v270 = vmul.f32 %v268, %v84
    %v273 = vrot.slane %v269, 1
    %v274 = vrot.slane %v270, 1
    %v275 = vsel %vm95, %v273, %v274
    %v278 = vadd.f32 %v265, %v275
    %v279 = vadd.f32 %v266, %v274
    %s280 = sld [smem:[#allocation6 + $0xe]]
    %v281 = vstv %s280
    %v282 = vmul.f32 %v281, %v83
    %v283 = vmul.f32 %v281, %v84
    %v286 = vrot.slane %v282, 2
    %v287 = vrot.slane %v283, 2
    %v288 = vsel %vm109, %v286, %v287
    %v291 = vadd.f32 %v278, %v288
    %v292 = vadd.f32 %v279, %v287
    %s293 = sld [smem:[#allocation7 + $0x4]]
    %v294 = vstv %s293
    %v295 = vadd.f32 %v291, %v294
    %v296 = vadd.f32 %v292, %v294
    %v297 = vmax.f32 %v295, 0.0
    %v298 = vmax.f32 %v296, 0.0
    %v299 = vsel %vm109, %v298, -inf
    %v300 = vmax.f32 %v297, %v299
    %v301 = vrot.slane %v300, 4
    %v302 = vmax.f32 %v300, %v301
    %v303 = vrot.slane %v302, 2
    %v304 = vmax.f32 %v302, %v303
    %v305 = vrot.slane %v304, 1
    %v306 = vmax.f32 %v304, %v305
    %s307 = sld [smem:[#allocation6 + $0xf]]
    %v308 = vstv %s307
    %v309 = vmul.f32 %v308, %v83
    %v310 = vmul.f32 %v308, %v84
    %s311 = sld [smem:[#allocation6 + $0x10]]
    %v312 = vstv %s311
    %v313 = vmul.f32 %v312, %v83
    %v314 = vmul.f32 %v312, %v84
    %v317 = vrot.slane %v313, 1
    %v318 = vrot.slane %v314, 1
    %v319 = vsel %vm95, %v317, %v318
    %v322 = vadd.f32 %v309, %v319
    %v323 = vadd.f32 %v310, %v318
    %s324 = sld [smem:[#allocation6 + $0x11]]
    %v325 = vstv %s324
    %v326 = vmul.f32 %v325, %v83
    %v327 = vmul.f32 %v325, %v84
    %v330 = vrot.slane %v326, 2
    %v331 = vrot.slane %v327, 2
    %v332 = vsel %vm109, %v330, %v331
    %v335 = vadd.f32 %v322, %v332
    %v336 = vadd.f32 %v323, %v331
    %s337 = sld [smem:[#allocation7 + $0x5]]
    %v338 = vstv %s337
    %v339 = vadd.f32 %v335, %v338
    %v340 = vadd.f32 %v336, %v338
    %v341 = vmax.f32 %v339, 0.0
    %v342 = vmax.f32 %v340, 0.0
    %v343 = vsel %vm109, %v342, -inf
    %v344 = vmax.f32 %v341, %v343
    %v345 = vrot.slane %v344, 4
    %v346 = vmax.f32 %v344, %v345
    %v347 = vrot.slane %v346, 2
    %v348 = vmax.f32 %v346, %v347
    %v349 = vrot.slane %v348, 1
    %v350 = vmax.f32 %v348, %v349
    %s351 = sld [smem:[#allocation6 + $0x12]]
    %v352 = vstv %s351
    %v353 = vmul.f32 %v352, %v83
    %v354 = vmul.f32 %v352, %v84
    %s355 = sld [smem:[#allocation6 + $0x13]]
    %v356 = vstv %s355
    %v357 = vmul.f32 %v356, %v83
    %v358 = vmul.f32 %v356, %v84
    %v361 = vrot.slane %v357, 1
    %v362 = vrot.slane %v358, 1
    %v363 = vsel %vm95, %v361, %v362
    %v366 = vadd.f32 %v353, %v363
    %v367 = vadd.f32 %v354, %v362
    %s368 = sld [smem:[#allocation6 + $0x14]]
    %v369 = vstv %s368
    %v370 = vmul.f32 %v369, %v83
    %v371 = vmul.f32 %v369, %v84
    %v374 = vrot.slane %v370, 2
    %v375 = vrot.slane %v371, 2
    %v376 = vsel %vm109, %v374, %v375
    %v379 = vadd.f32 %v366, %v376
    %v380 = vadd.f32 %v367, %v375
    %s381 = sld [smem:[#allocation7 + $0x6]]
    %v382 = vstv %s381
    %v383 = vadd.f32 %v379, %v382
    %v384 = vadd.f32 %v380, %v382
    %v385 = vmax.f32 %v383, 0.0
    %v386 = vmax.f32 %v384, 0.0
    %v387 = vsel %vm109, %v386, -inf
    %v388 = vmax.f32 %v385, %v387
    %v389 = vrot.slane %v388, 4
    %v390 = vmax.f32 %v388, %v389
    %v391 = vrot.slane %v390, 2
    %v392 = vmax.f32 %v390, %v391
    %v393 = vrot.slane %v392, 1
    %v394 = vmax.f32 %v392, %v393
    %s395 = sld [smem:[#allocation6 + $0x15]]
    %v396 = vstv %s395
    %v397 = vmul.f32 %v396, %v83
    %v398 = vmul.f32 %v396, %v84
    %s399 = sld [smem:[#allocation6 + $0x16]]
    %v400 = vstv %s399
    %v401 = vmul.f32 %v400, %v83
    %v402 = vmul.f32 %v400, %v84
    %v405 = vrot.slane %v401, 1
    %v406 = vrot.slane %v402, 1
    %v407 = vsel %vm95, %v405, %v406
    %v410 = vadd.f32 %v397, %v407
    %v411 = vadd.f32 %v398, %v406
    %s412 = sld [smem:[#allocation6 + $0x17]]
    %v413 = vstv %s412
    %v414 = vmul.f32 %v413, %v83
    %v415 = vmul.f32 %v413, %v84
    %v418 = vrot.slane %v414, 2
    %v419 = vrot.slane %v415, 2
    %v420 = vsel %vm109, %v418, %v419
    %v423 = vadd.f32 %v410, %v420
    %v424 = vadd.f32 %v411, %v419
    %s425 = sld [smem:[#allocation7 + $0x7]]
    %v426 = vstv %s425
    %v427 = vadd.f32 %v423, %v426
    %v428 = vadd.f32 %v424, %v426
    %v429 = vmax.f32 %v427, 0.0
    %v430 = vmax.f32 %v428, 0.0
    %v431 = vsel %vm109, %v430, -inf
    %v432 = vmax.f32 %v429, %v431
    %v433 = vrot.slane %v432, 4
    %v434 = vmax.f32 %v432, %v433
    %v435 = vrot.slane %v434, 2
    %v436 = vmax.f32 %v434, %v435
    %v437 = vrot.slane %v436, 1
    %v438 = vmax.f32 %v436, %v437
    %s439 = sld [smem:[#allocation9]]
    %v440 = vstv %s439
    %v441 = vmul.f32 %v440, %v130
    %s442 = sld [smem:[#allocation9 + $0x1]]
    %v443 = vstv %s442
    %v444 = vmul.f32 %v443, %v174
    %v445 = vadd.f32 %v441, %v444
    %s446 = sld [smem:[#allocation9 + $0x2]]
    %v447 = vstv %s446
    %v448 = vmul.f32 %v447, %v218
    %v449 = vadd.f32 %v445, %v448
    %s450 = sld [smem:[#allocation9 + $0x3]]
    %v451 = vstv %s450
    %v452 = vmul.f32 %v451, %v262
    %v453 = vadd.f32 %v449, %v452
    %s454 = sld [smem:[#allocation9 + $0x4]]
    %v455 = vstv %s454
    %v456 = vmul.f32 %v455, %v306
    %v457 = vadd.f32 %v453, %v456
    %s458 = sld [smem:[#allocation9 + $0x5]]
    %v459 = vstv %s458
    %v460 = vmul.f32 %v459, %v350
    %v461 = vadd.f32 %v457, %v460
    %s462 = sld [smem:[#allocation9 + $0x6]]
    %v463 = vstv %s462
    %v464 = vmul.f32 %v463, %v394
    %v465 = vadd.f32 %v461, %v464
    %s466 = sld [smem:[#allocation9 + $0x7]]
    %v467 = vstv %s466
    %v468 = vmul.f32 %v467, %v438
    %v469 = vadd.f32 %v465, %v468
    %s470 = sld [smem:[#allocation10]]
    %v471 = vstv %s470
    %v472 = vadd.f32 %v469, %v471
    %s473 = sld [smem:[#allocation9 + $0x8]]
    %v474 = vstv %s473
    %v475 = vmul.f32 %v474, %v130
    %s476 = sld [smem:[#allocation9 + $0x9]]
    %v477 = vstv %s476
    %v478 = vmul.f32 %v477, %v174
    %v479 = vadd.f32 %v475, %v478
    %s480 = sld [smem:[#allocation9 + $0xa]]
    %v481 = vstv %s480
    %v482 = vmul.f32 %v481, %v218
    %v483 = vadd.f32 %v479, %v482
    %s484 = sld [smem:[#allocation9 + $0xb]]
    %v485 = vstv %s484
    %v486 = vmul.f32 %v485, %v262
    %v487 = vadd.f32 %v483, %v486
    %s488 = sld [smem:[#allocation9 + $0xc]]
    %v489 = vstv %s488
    %v490 = vmul.f32 %v489, %v306
    %v491 = vadd.f32 %v487, %v490
    %s492 = sld [smem:[#allocation9 + $0xd]]
    %v493 = vstv %s492
    %v494 = vmul.f32 %v493, %v350
    %v495 = vadd.f32 %v491, %v494
    %s496 = sld [smem:[#allocation9 + $0xe]]
    %v497 = vstv %s496
    %v498 = vmul.f32 %v497, %v394
    %v499 = vadd.f32 %v495, %v498
    %s500 = sld [smem:[#allocation9 + $0xf]]
    %v501 = vstv %s500
    %v502 = vmul.f32 %v501, %v438
    %v503 = vadd.f32 %v499, %v502
    %s504 = sld [smem:[#allocation10 + $0x1]]
    %v505 = vstv %s504
    %v506 = vadd.f32 %v503, %v505
    %s507 = sld [smem:[#allocation9 + $0x10]]
    %v508 = vstv %s507
    %v509 = vmul.f32 %v508, %v130
    %s510 = sld [smem:[#allocation9 + $0x11]]
    %v511 = vstv %s510
    %v512 = vmul.f32 %v511, %v174
    %v513 = vadd.f32 %v509, %v512
    %s514 = sld [smem:[#allocation9 + $0x12]]
    %v515 = vstv %s514
    %v516 = vmul.f32 %v515, %v218
    %v517 = vadd.f32 %v513, %v516
    %s518 = sld [smem:[#allocation9 + $0x13]]
    %v519 = vstv %s518
    %v520 = vmul.f32 %v519, %v262
    %v521 = vadd.f32 %v517, %v520
    %s522 = sld [smem:[#allocation9 + $0x14]]
    %v523 = vstv %s522
    %v524 = vmul.f32 %v523, %v306
    %v525 = vadd.f32 %v521, %v524
    %s526 = sld [smem:[#allocation9 + $0x15]]
    %v527 = vstv %s526
    %v528 = vmul.f32 %v527, %v350
    %v529 = vadd.f32 %v525, %v528
    %s530 = sld [smem:[#allocation9 + $0x16]]
    %v531 = vstv %s530
    %v532 = vmul.f32 %v531, %v394
    %v533 = vadd.f32 %v529, %v532
    %s534 = sld [smem:[#allocation9 + $0x17]]
    %v535 = vstv %s534
    %v536 = vmul.f32 %v535, %v438
    %v537 = vadd.f32 %v533, %v536
    %s538 = sld [smem:[#allocation10 + $0x2]]
    %v539 = vstv %s538
    %v540 = vadd.f32 %v537, %v539
    %s541 = sld [smem:[#allocation9 + $0x18]]
    %v542 = vstv %s541
    %v543 = vmul.f32 %v542, %v130
    %s544 = sld [smem:[#allocation9 + $0x19]]
    %v545 = vstv %s544
    %v546 = vmul.f32 %v545, %v174
    %v547 = vadd.f32 %v543, %v546
    %s548 = sld [smem:[#allocation9 + $0x1a]]
    %v549 = vstv %s548
    %v550 = vmul.f32 %v549, %v218
    %v551 = vadd.f32 %v547, %v550
    %s552 = sld [smem:[#allocation9 + $0x1b]]
    %v553 = vstv %s552
    %v554 = vmul.f32 %v553, %v262
    %v555 = vadd.f32 %v551, %v554
    %s556 = sld [smem:[#allocation9 + $0x1c]]
    %v557 = vstv %s556
    %v558 = vmul.f32 %v557, %v306
    %v559 = vadd.f32 %v555, %v558
    %s560 = sld [smem:[#allocation9 + $0x1d]]
    %v561 = vstv %s560
    %v562 = vmul.f32 %v561, %v350
    %v563 = vadd.f32 %v559, %v562
    %s564 = sld [smem:[#allocation9 + $0x1e]]
    %v565 = vstv %s564
    %v566 = vmul.f32 %v565, %v394
    %v567 = vadd.f32 %v563, %v566
    %s568 = sld [smem:[#allocation9 + $0x1f]]
    %v569 = vstv %s568
    %v570 = vmul.f32 %v569, %v438
    %v571 = vadd.f32 %v567, %v570
    %s572 = sld [smem:[#allocation10 + $0x3]]
    %v573 = vstv %s572
    %v574 = vadd.f32 %v571, %v573
    %vm575 = vcmask 1040384
    %v576 = vsel %vm575, %v472, %v506
    %vm577 = vcmask 1041408
    %v578 = vsel %vm577, %v576, %v540
    %vm579 = vcmask 1042432
    %v580 = vsel %vm579, %v578, %v574
    %581 = vst [vmem:[#allocation12] sm:$0xf] %v580
    // Predicated region
    $region42: #{tpu_custom_call.1} parent=1 // pred_check
      _
    $region43: #{tpu_custom_call.1} parent=1 // pred_check_branch
      %583 = sbr.rel (0) target = $region45
    $region44: #{tpu_custom_call.1} parent=1 // pred_region
      %s585 = ssub.s32 64, 64
      %586 = vsyncadd [#allocation4], %s585
      %s588 = sshll.u32 [#allocation12], 4
      %s589 = int_to_ptr.vmem [resolvable:$true] %s588
      %591 = dma.vmem_to_hbm [thread:$0]  %s589, 64, %s5, [#allocation4]
    $region45: #{tpu_custom_call.1} parent=1 // pred_fallthru
      _
    // Predicated region
    $region46: #{tpu_custom_call.1} parent=1 // pred_check
      _
    $region47: #{tpu_custom_call.1} parent=1 // pred_check_branch
      %593 = sbr.rel (0) target = $region49
    $region48: #{tpu_custom_call.1} parent=1 // pred_region
      %594 = dma.done [#allocation4], 64
    $region49: #{tpu_custom_call.1} parent=1 // pred_fallthru
      _
    %595 = vsyncpa [#allocation3], 1
    %596 = vsyncpa [#allocation4], 1
    %597 = vsyncpa [#allocation5], 1
    %598 = vsyncpa [#allocation8], 1
    %599 = vsyncpa [#allocation11], 1

</llo_original>
